<compile_context>
chip_gen: v6e
topology: v6e:2x2x1
jax: 0.10.0
libtpu: 0.0.40
codegen_flags: <defaults>
</compile_context>

<pallas_src>
import functools

import jax
import jax.numpy as jnp
from jax.experimental import pallas as pl
from jax.experimental.pallas import tpu as pltpu

H_FIXED = 30      # the module hard-codes rearrange(..., H=30)
BN_EPS = 1e-5


def _conv_relu_stats_kernel(x_ref, wt_ref, b_ref, y_ref, sum_ref, ssq_ref,
                            *, batch_valid, mask_tail):
    """One grid step = BB batch elements.

    x_ref  : (BB, H, W*E)        bf16 activations (read once from HBM)
    wt_ref : (KH, W*E, Wo*Cout)  banded (Toeplitz) weights, VMEM-resident
    b_ref  : (1, Wo*Cout)        conv bias tiled over Wo, f32
    y_ref  : (BB, Ho, Wo*Cout)   conv + bias + ReLU output, f32
    sum_ref/ssq_ref : (1, 1, Wo*Cout) per-block partial BatchNorm statistics
                      (reduced across blocks in plain JAX -> grid stays parallel)
    """
    BB = x_ref.shape[0]
    KH = wt_ref.shape[0]
    Ho = y_ref.shape[1]
    N = y_ref.shape[2]

    s = jnp.zeros((1, N), jnp.float32)
    q = jnp.zeros((1, N), jnp.float32)
    for bb in range(BB):                       # static unroll; BB is small
        acc = jnp.zeros((Ho, N), jnp.float32)
        for kh in range(KH):                   # one 2-D MXU matmul per kernel row
            acc += jnp.dot(x_ref[bb, kh:kh + Ho, :], wt_ref[kh],
                           preferred_element_type=jnp.float32)
        acc = jnp.maximum(acc + b_ref[...], 0.0)          # conv bias + ReLU, f32
        if mask_tail:
            # Zero rows of zero-padded tail batches so they don't pollute stats.
            valid = (pl.program_id(0) * BB + bb) < batch_valid
            acc = acc * jnp.where(valid, 1.0, 0.0).astype(jnp.float32)
        y_ref[bb] = acc
        s = s + jnp.sum(acc, axis=0, keepdims=True)
        q = q + jnp.sum(acc * acc, axis=0, keepdims=True)
    sum_ref[0] = s
    ssq_ref[0] = q


def proteinconv2d_forward(tokens, params, *, matmul_dtype=jnp.bfloat16,
                          target_rows=512, core_parallel=False):
    emb = params["embedding"]        # (26, E)
    w = params["conv_w"]             # (KH, KW, E, Cout)  HWIO
    b = params["conv_b"]             # (Cout,)
    gamma = params["bn_gamma"]       # (Cout,)
    beta = params["bn_beta"]         # (Cout,)

    B, L = tokens.shape
    E = emb.shape[1]
    KH, KW, _, Cout = w.shape
    H = H_FIXED
    W = L // H
    Ho, Wo = H - KH + 1, W - KW + 1
    P = Ho * Wo
    N = Wo * Cout                    # lane width of the kernel's working tiles
    K = W * E                        # contraction width of the banded matmul

    # ---- plain-JAX glue (no heavy compute): embedding gather + layout + weights ----
    # The gather stays in XLA; (B, L, E) -> (B, H, W*E) is a free row-major reshape.
    x = jnp.take(emb, tokens, axis=0).reshape(B, H, K).astype(matmul_dtype)

    # Banded (Toeplitz) weights: fold the KW taps and the Wo output columns into a
    # (W*E, Wo*Cout) matrix per kernel row kh.  Weights are tiny, so the band's
    # zero padding costs ~W/KW extra MXU FLOPs but ZERO extra HBM activation
    # traffic (the kernel is bandwidth-bound; the MXU has slack).  K is NOT padded
    # in HBM -- Mosaic handles the ragged tail.
    # TODO(synk): for very wide W, switch to per-tap (Ho, E)x(E, Cout) accumulation
    # to avoid the W/KW compute inflation.
    wq = w.astype(matmul_dtype)
    wt = jnp.zeros((KH, K, N), matmul_dtype)
    for kh in range(KH):
        for kw in range(KW):
            for wo in range(Wo):
                wt = wt.at[kh, (wo + kw) * E:(wo + kw + 1) * E,
                           wo * Cout:(wo + 1) * Cout].set(wq[kh, kw])
    b_tiled = jnp.tile(b, Wo).reshape(1, N).astype(jnp.float32)

    # ---- batch-block size: big blocks, clamped to a conservative VMEM budget ----
    xbytes = jnp.dtype(matmul_dtype).itemsize
    def footprint(bb):               # 2x-buffered x + resident wt + 2x y + stats
        return (2 * bb * H * K * xbytes + KH * K * N * xbytes
                + 2 * bb * Ho * N * 4 + 4 * 2 * N * 4)
    BB = max(1, min(B, -(-target_rows // Ho)))
    while BB > 1 and footprint(BB) > (8 << 20):   # fits all gens' scoped VMEM
        BB -= 1
    NB = pl.cdiv(B, BB)
    Bpad = NB * BB
    if Bpad != B:
        x = jnp.pad(x, ((0, Bpad - B), (0, 0), (0, 0)))

    kern = functools.partial(_conv_relu_stats_kernel,
                             batch_valid=B, mask_tail=(Bpad != B))
    # Set core_parallel=True on v7x (2 TensorCores/chip) to split the batch grid
    # across cores; plain "parallel" everywhere else.
    dim_sem = (pltpu.CORE_PARALLEL,) if core_parallel else ("parallel",)

    y, sums, ssqs = pl.pallas_call(
        kern,
        out_shape=(jax.ShapeDtypeStruct((Bpad, Ho, N), jnp.float32),
                   jax.ShapeDtypeStruct((NB, 1, N), jnp.float32),
                   jax.ShapeDtypeStruct((NB, 1, N), jnp.float32)),
        grid_spec=pltpu.PrefetchScalarGridSpec(
            num_scalar_prefetch=0,
            grid=(NB,),
            # TODO(synk): if DMA is still exposed at scale, add
            # pipeline_mode=pl.Buffered(3) to the x spec only.
            in_specs=[pl.BlockSpec((BB, H, K), lambda i: (i, 0, 0)),
                      pl.BlockSpec((KH, K, N), lambda i: (0, 0, 0)),
                      pl.BlockSpec((1, N), lambda i: (0, 0))],
            out_specs=[pl.BlockSpec((BB, Ho, N), lambda i: (i, 0, 0)),
                       pl.BlockSpec((1, 1, N), lambda i: (i, 0, 0)),
                       pl.BlockSpec((1, 1, N), lambda i: (i, 0, 0))]),
        compiler_params=pltpu.CompilerParams(dimension_semantics=dim_sem),
    )(x, wt, b_tiled)

    # ---- BatchNorm2d (training mode) stats: cross-block reduction in f32 ----
    n = jnp.float32(B * P)
    ch_sum = sums.reshape(NB, Wo, Cout).sum(axis=(0, 1))
    ch_ssq = ssqs.reshape(NB, Wo, Cout).sum(axis=(0, 1))
    mean = ch_sum / n
    var = jnp.maximum(ch_ssq / n - mean * mean, 0.0)
    # TODO(synk): switch to two-pass / Welford stats if B*P grows enough for
    # E[x^2] - mean^2 cancellation to matter.
    inv_std = jax.lax.rsqrt(var + BN_EPS)
    scale = gamma * inv_std
    shift = beta - mean * scale

    # ---- folded BN affine in plain jnp: XLA fuses it with the (free) reshape ----
    # (Ho, Wo*Cout) and (Ho*Wo, Cout) share the same row-major layout.
    y = y[:B].reshape(B, P, Cout)
    return y * scale + shift


def init_params(key, embedding_dim, num_filters, kernel_size):
    E, Cout, k = embedding_dim, num_filters[0], kernel_size[0]
    k_emb, k_w, k_b = jax.random.split(key, 3)
    emb = jax.random.normal(k_emb, (26, E), jnp.float32) * 0.1
    emb = emb.at[0].set(0.0)                                  # padding_idx=0
    fan_in = E * k * k
    w = jax.random.normal(k_w, (k, k, E, Cout), jnp.float32) / jnp.sqrt(fan_in)
    b = jax.random.uniform(k_b, (Cout,), jnp.float32, minval=-1.0, maxval=1.0) / jnp.sqrt(fan_in)
    gamma = jnp.ones((Cout,), jnp.float32)                    # BatchNorm default init
    beta = jnp.zeros((Cout,), jnp.float32)
    return dict(embedding=emb, conv_w=w, conv_b=b, bn_gamma=gamma, bn_beta=beta)


def reference_forward(tokens, params, matmul_dtype=jnp.float32):
    """Pure-JAX reference mirroring the PyTorch forward (training-mode BN).
    `matmul_dtype` lets the conv operands match the kernel's MXU dtype."""
    emb, w, b = params["embedding"], params["conv_w"], params["conv_b"]
    gamma, beta = params["bn_gamma"], params["bn_beta"]
    B, L = tokens.shape
    E = emb.shape[1]
    Cout = w.shape[-1]
    H, W = H_FIXED, L // H_FIXED
    x = jnp.take(emb, tokens, axis=0).reshape(B, H, W, E)
    y = jax.lax.conv_general_dilated(
        x.astype(matmul_dtype), w.astype(matmul_dtype), (1, 1), "VALID",
        dimension_numbers=("NHWC", "HWIO", "NHWC"),
        preferred_element_type=jnp.float32)
    y = jax.nn.relu(y + b)
    mean = jnp.mean(y, axis=(0, 1, 2))
    var = jnp.mean((y - mean) ** 2, axis=(0, 1, 2))
    y = (y - mean) / jnp.sqrt(var + BN_EPS) * gamma + beta
    return y.reshape(B, -1, Cout)


if __name__ == "__main__":
    embedding_dim = 32
    num_filters = [32]
    kernel_size = [3]
    B, L = 2, 120                     # L = 30 * 4  (module requires L % 30 == 0)

    key = jax.random.PRNGKey(0)
    k_tok, k_par = jax.random.split(key)
    tokens = jax.random.randint(k_tok, (B, L), 0, 26, dtype=jnp.int32)
    params = init_params(k_par, embedding_dim, num_filters, kernel_size)

    out = jax.jit(proteinconv2d_forward)(tokens, params)
    out = jax.block_until_ready(out)

    Ho, Wo = 30 - kernel_size[0] + 1, (L // 30) - kernel_size[0] + 1
    assert out.shape == (B, Ho * Wo, num_filters[0]), out.shape

    # Tight check against a reference with matching bf16 MXU operands (f32 accum).
    ref_bf16 = reference_forward(tokens, params, matmul_dtype=jnp.bfloat16)
    assert jnp.allclose(out, ref_bf16, atol=2e-3, rtol=2e-3), \
        float(jnp.max(jnp.abs(out - ref_bf16)))
    # Loose sanity check against the exact f32 module semantics.
    ref_f32 = reference_forward(tokens, params)
    assert float(jnp.max(jnp.abs(out - ref_f32))) < 0.1, \
        float(jnp.max(jnp.abs(out - ref_f32)))

    print("KERNEL_OK")
</pallas_src>

<mosaic_0001>
module attributes {stable_mosaic.version = 11 : i64} {
  func.func @_conv_relu_stats_kernel(%arg0: i32, %arg1: memref<2x30x128xbf16, #tpu.memory_space<vmem>>, %arg2: memref<3x128x64xbf16, #tpu.memory_space<vmem>>, %arg3: memref<1x64xf32, #tpu.memory_space<vmem>>, %arg4: memref<2x28x64xf32, #tpu.memory_space<vmem>>, %arg5: memref<1x1x64xf32, #tpu.memory_space<vmem>>, %arg6: memref<1x1x64xf32, #tpu.memory_space<vmem>>) attributes {dimension_semantics = [#tpu.dimension_semantics<parallel>], iteration_bounds = array<i64: 1>, scalar_prefetch = 0 : i64, scratch_operands = 0 : i64, tpu.core_type = #tpu.core_type<tc>, window_params = [{transform_indices = @transform_0, window_bounds = array<i64: 2, 30, 128>}, {pipeline_mode = #tpu.pipeline_mode<synchronous>, transform_indices = @transform_1, window_bounds = array<i64: 3, 128, 64>}, {pipeline_mode = #tpu.pipeline_mode<synchronous>, transform_indices = @transform_2, window_bounds = array<i64: 1, 64>}, {transform_indices = @transform_3, window_bounds = array<i64: 2, 28, 64>}, {transform_indices = @transform_4, window_bounds = array<i64: 1, 1, 64>}, {transform_indices = @transform_5, window_bounds = array<i64: 1, 1, 64>}]} {
    %cst = arith.constant 0.000000e+00 : f32
    %0 = vector.broadcast %cst : f32 to vector<1x64xf32>
    %cst_0 = arith.constant 0.000000e+00 : f32
    %1 = vector.broadcast %cst_0 : f32 to vector<1x64xf32>
    %cst_1 = arith.constant 0.000000e+00 : f32
    %2 = vector.broadcast %cst_1 : f32 to vector<28x64xf32>
    %c0 = arith.constant 0 : index
    %c0_2 = arith.constant 0 : index
    %c0_3 = arith.constant 0 : index
    %3 = vector.load %arg1[%c0, %c0_2, %c0_3] : memref<2x30x128xbf16, #tpu.memory_space<vmem>>, vector<1x28x128xbf16>
    %4 = vector.shape_cast %3 : vector<1x28x128xbf16> to vector<28x128xbf16>
    %c0_4 = arith.constant 0 : index
    %c0_5 = arith.constant 0 : index
    %c0_6 = arith.constant 0 : index
    %5 = vector.load %arg2[%c0_4, %c0_5, %c0_6] : memref<3x128x64xbf16, #tpu.memory_space<vmem>>, vector<1x128x64xbf16>
    %6 = vector.shape_cast %5 : vector<1x128x64xbf16> to vector<128x64xbf16>
    %cst_7 = arith.constant dense<0.000000e+00> : vector<28x64xf32>
    %7 = tpu.matmul %4, %6, %cst_7 {dimension_numbers = #tpu.dot_dimension_numbers<[1], [0], [0], [1], [0, 0, 1, 1], [], []>} : vector<28x128xbf16>, vector<128x64xbf16>, vector<28x64xf32> -> vector<28x64xf32>
    %8 = arith.addf %2, %7 : vector<28x64xf32>
    %c0_8 = arith.constant 0 : index
    %c1 = arith.constant 1 : index
    %c0_9 = arith.constant 0 : index
    %9 = vector.load %arg1[%c0_8, %c1, %c0_9] : memref<2x30x128xbf16, #tpu.memory_space<vmem>>, vector<1x28x128xbf16>
    %10 = vector.shape_cast %9 : vector<1x28x128xbf16> to vector<28x128xbf16>
    %c1_10 = arith.constant 1 : index
    %c0_11 = arith.constant 0 : index
    %c0_12 = arith.constant 0 : index
    %11 = vector.load %arg2[%c1_10, %c0_11, %c0_12] : memref<3x128x64xbf16, #tpu.memory_space<vmem>>, vector<1x128x64xbf16>
    %12 = vector.shape_cast %11 : vector<1x128x64xbf16> to vector<128x64xbf16>
    %cst_13 = arith.constant dense<0.000000e+00> : vector<28x64xf32>
    %13 = tpu.matmul %10, %12, %cst_13 {dimension_numbers = #tpu.dot_dimension_numbers<[1], [0], [0], [1], [0, 0, 1, 1], [], []>} : vector<28x128xbf16>, vector<128x64xbf16>, vector<28x64xf32> -> vector<28x64xf32>
    %14 = arith.addf %8, %13 : vector<28x64xf32>
    %c0_14 = arith.constant 0 : index
    %c2 = arith.constant 2 : index
    %c0_15 = arith.constant 0 : index
    %15 = vector.load %arg1[%c0_14, %c2, %c0_15] : memref<2x30x128xbf16, #tpu.memory_space<vmem>>, vector<1x28x128xbf16>
    %16 = vector.shape_cast %15 : vector<1x28x128xbf16> to vector<28x128xbf16>
    %c2_16 = arith.constant 2 : index
    %c0_17 = arith.constant 0 : index
    %c0_18 = arith.constant 0 : index
    %17 = vector.load %arg2[%c2_16, %c0_17, %c0_18] : memref<3x128x64xbf16, #tpu.memory_space<vmem>>, vector<1x128x64xbf16>
    %18 = vector.shape_cast %17 : vector<1x128x64xbf16> to vector<128x64xbf16>
    %cst_19 = arith.constant dense<0.000000e+00> : vector<28x64xf32>
    %19 = tpu.matmul %16, %18, %cst_19 {dimension_numbers = #tpu.dot_dimension_numbers<[1], [0], [0], [1], [0, 0, 1, 1], [], []>} : vector<28x128xbf16>, vector<128x64xbf16>, vector<28x64xf32> -> vector<28x64xf32>
    %20 = arith.addf %14, %19 : vector<28x64xf32>
    %c0_20 = arith.constant 0 : index
    %c0_21 = arith.constant 0 : index
    %21 = vector.load %arg3[%c0_20, %c0_21] : memref<1x64xf32, #tpu.memory_space<vmem>>, vector<1x64xf32>
    %22 = vector.broadcast %21 : vector<1x64xf32> to vector<28x64xf32>
    %23 = arith.addf %20, %22 : vector<28x64xf32>
    %cst_22 = arith.constant 0.000000e+00 : f32
    %24 = vector.broadcast %cst_22 : f32 to vector<28x64xf32>
    %25 = arith.maximumf %23, %24 : vector<28x64xf32>
    %c0_23 = arith.constant 0 : index
    %c0_24 = arith.constant 0 : index
    %c0_25 = arith.constant 0 : index
    %26 = vector.load %arg4[%c0_23, %c0_24, %c0_25] : memref<2x28x64xf32, #tpu.memory_space<vmem>>, vector<1x28x64xf32>
    %27 = vector.shape_cast %26 : vector<1x28x64xf32> to vector<28x64xf32>
    %28 = vector.shape_cast %25 : vector<28x64xf32> to vector<1x28x64xf32>
    tpu.vector_store %arg4[%c0_23, %c0_24, %c0_25], %28 {strides = array<i32>} : memref<2x28x64xf32, #tpu.memory_space<vmem>>, vector<1x28x64xf32>,
    %cst_26 = arith.constant dense<0.000000e+00> : vector<64xf32>
    %29 = vector.multi_reduction <add>, %25, %cst_26 [0] : vector<28x64xf32> to vector<64xf32>
    %30 = vector.shape_cast %29 : vector<64xf32> to vector<1x64xf32>
    %31 = arith.addf %0, %30 : vector<1x64xf32>
    %32 = arith.mulf %25, %25 : vector<28x64xf32>
    %cst_27 = arith.constant dense<0.000000e+00> : vector<64xf32>
    %33 = vector.multi_reduction <add>, %32, %cst_27 [0] : vector<28x64xf32> to vector<64xf32>
    %34 = vector.shape_cast %33 : vector<64xf32> to vector<1x64xf32>
    %35 = arith.addf %1, %34 : vector<1x64xf32>
    %cst_28 = arith.constant 0.000000e+00 : f32
    %36 = vector.broadcast %cst_28 : f32 to vector<28x64xf32>
    %c1_29 = arith.constant 1 : index
    %c0_30 = arith.constant 0 : index
    %c0_31 = arith.constant 0 : index
    %37 = vector.load %arg1[%c1_29, %c0_30, %c0_31] : memref<2x30x128xbf16, #tpu.memory_space<vmem>>, vector<1x28x128xbf16>
    %38 = vector.shape_cast %37 : vector<1x28x128xbf16> to vector<28x128xbf16>
    %c0_32 = arith.constant 0 : index
    %c0_33 = arith.constant 0 : index
    %c0_34 = arith.constant 0 : index
    %39 = vector.load %arg2[%c0_32, %c0_33, %c0_34] : memref<3x128x64xbf16, #tpu.memory_space<vmem>>, vector<1x128x64xbf16>
    %40 = vector.shape_cast %39 : vector<1x128x64xbf16> to vector<128x64xbf16>
    %cst_35 = arith.constant dense<0.000000e+00> : vector<28x64xf32>
    %41 = tpu.matmul %38, %40, %cst_35 {dimension_numbers = #tpu.dot_dimension_numbers<[1], [0], [0], [1], [0, 0, 1, 1], [], []>} : vector<28x128xbf16>, vector<128x64xbf16>, vector<28x64xf32> -> vector<28x64xf32>
    %42 = arith.addf %36, %41 : vector<28x64xf32>
    %c1_36 = arith.constant 1 : index
    %c1_37 = arith.constant 1 : index
    %c0_38 = arith.constant 0 : index
    %43 = vector.load %arg1[%c1_36, %c1_37, %c0_38] : memref<2x30x128xbf16, #tpu.memory_space<vmem>>, vector<1x28x128xbf16>
    %44 = vector.shape_cast %43 : vector<1x28x128xbf16> to vector<28x128xbf16>
    %c1_39 = arith.constant 1 : index
    %c0_40 = arith.constant 0 : index
    %c0_41 = arith.constant 0 : index
    %45 = vector.load %arg2[%c1_39, %c0_40, %c0_41] : memref<3x128x64xbf16, #tpu.memory_space<vmem>>, vector<1x128x64xbf16>
    %46 = vector.shape_cast %45 : vector<1x128x64xbf16> to vector<128x64xbf16>
    %cst_42 = arith.constant dense<0.000000e+00> : vector<28x64xf32>
    %47 = tpu.matmul %44, %46, %cst_42 {dimension_numbers = #tpu.dot_dimension_numbers<[1], [0], [0], [1], [0, 0, 1, 1], [], []>} : vector<28x128xbf16>, vector<128x64xbf16>, vector<28x64xf32> -> vector<28x64xf32>
    %48 = arith.addf %42, %47 : vector<28x64xf32>
    %c1_43 = arith.constant 1 : index
    %c2_44 = arith.constant 2 : index
    %c0_45 = arith.constant 0 : index
    %49 = vector.load %arg1[%c1_43, %c2_44, %c0_45] : memref<2x30x128xbf16, #tpu.memory_space<vmem>>, vector<1x28x128xbf16>
    %50 = vector.shape_cast %49 : vector<1x28x128xbf16> to vector<28x128xbf16>
    %c2_46 = arith.constant 2 : index
    %c0_47 = arith.constant 0 : index
    %c0_48 = arith.constant 0 : index
    %51 = vector.load %arg2[%c2_46, %c0_47, %c0_48] : memref<3x128x64xbf16, #tpu.memory_space<vmem>>, vector<1x128x64xbf16>
    %52 = vector.shape_cast %51 : vector<1x128x64xbf16> to vector<128x64xbf16>
    %cst_49 = arith.constant dense<0.000000e+00> : vector<28x64xf32>
    %53 = tpu.matmul %50, %52, %cst_49 {dimension_numbers = #tpu.dot_dimension_numbers<[1], [0], [0], [1], [0, 0, 1, 1], [], []>} : vector<28x128xbf16>, vector<128x64xbf16>, vector<28x64xf32> -> vector<28x64xf32>
    %54 = arith.addf %48, %53 : vector<28x64xf32>
    %c0_50 = arith.constant 0 : index
    %c0_51 = arith.constant 0 : index
    %55 = vector.load %arg3[%c0_50, %c0_51] : memref<1x64xf32, #tpu.memory_space<vmem>>, vector<1x64xf32>
    %56 = vector.broadcast %55 : vector<1x64xf32> to vector<28x64xf32>
    %57 = arith.addf %54, %56 : vector<28x64xf32>
    %cst_52 = arith.constant 0.000000e+00 : f32
    %58 = vector.broadcast %cst_52 : f32 to vector<28x64xf32>
    %59 = arith.maximumf %57, %58 : vector<28x64xf32>
    %c1_53 = arith.constant 1 : index
    %c0_54 = arith.constant 0 : index
    %c0_55 = arith.constant 0 : index
    %60 = vector.load %arg4[%c1_53, %c0_54, %c0_55] : memref<2x28x64xf32, #tpu.memory_space<vmem>>, vector<1x28x64xf32>
    %61 = vector.shape_cast %60 : vector<1x28x64xf32> to vector<28x64xf32>
    %62 = vector.shape_cast %59 : vector<28x64xf32> to vector<1x28x64xf32>
    tpu.vector_store %arg4[%c1_53, %c0_54, %c0_55], %62 {strides = array<i32>} : memref<2x28x64xf32, #tpu.memory_space<vmem>>, vector<1x28x64xf32>,
    %cst_56 = arith.constant dense<0.000000e+00> : vector<64xf32>
    %63 = vector.multi_reduction <add>, %59, %cst_56 [0] : vector<28x64xf32> to vector<64xf32>
    %64 = vector.shape_cast %63 : vector<64xf32> to vector<1x64xf32>
    %65 = arith.addf %31, %64 : vector<1x64xf32>
    %66 = arith.mulf %59, %59 : vector<28x64xf32>
    %cst_57 = arith.constant dense<0.000000e+00> : vector<64xf32>
    %67 = vector.multi_reduction <add>, %66, %cst_57 [0] : vector<28x64xf32> to vector<64xf32>
    %68 = vector.shape_cast %67 : vector<64xf32> to vector<1x64xf32>
    %69 = arith.addf %35, %68 : vector<1x64xf32>
    %c0_58 = arith.constant 0 : index
    %c0_59 = arith.constant 0 : index
    %c0_60 = arith.constant 0 : index
    %70 = vector.load %arg5[%c0_58, %c0_59, %c0_60] : memref<1x1x64xf32, #tpu.memory_space<vmem>>, vector<1x1x64xf32>
    %71 = vector.shape_cast %70 : vector<1x1x64xf32> to vector<1x64xf32>
    %72 = vector.shape_cast %65 : vector<1x64xf32> to vector<1x1x64xf32>
    tpu.vector_store %arg5[%c0_58, %c0_59, %c0_60], %72 {strides = array<i32>} : memref<1x1x64xf32, #tpu.memory_space<vmem>>, vector<1x1x64xf32>,
    %c0_61 = arith.constant 0 : index
    %c0_62 = arith.constant 0 : index
    %c0_63 = arith.constant 0 : index
    %73 = vector.load %arg6[%c0_61, %c0_62, %c0_63] : memref<1x1x64xf32, #tpu.memory_space<vmem>>, vector<1x1x64xf32>
    %74 = vector.shape_cast %73 : vector<1x1x64xf32> to vector<1x64xf32>
    %75 = vector.shape_cast %69 : vector<1x64xf32> to vector<1x1x64xf32>
    tpu.vector_store %arg6[%c0_61, %c0_62, %c0_63], %75 {strides = array<i32>} : memref<1x1x64xf32, #tpu.memory_space<vmem>>, vector<1x1x64xf32>,
    return
  }
  func.func @transform_0(%arg0: i32) -> (i32, i32, i32) {
    %c0_i32 = arith.constant 0 : i32
    %c0_i32_0 = arith.constant 0 : i32
    %c0_i32_1 = arith.constant 0 : i32
    return %arg0, %c0_i32, %c0_i32_0 : i32, i32, i32
  }
  func.func @transform_1(%arg0: i32) -> (i32, i32, i32) {
    %c0_i32 = arith.constant 0 : i32
    %c0_i32_0 = arith.constant 0 : i32
    %c0_i32_1 = arith.constant 0 : i32
    %c0_i32_2 = arith.constant 0 : i32
    return %c0_i32, %c0_i32_0, %c0_i32_1 : i32, i32, i32
  }
  func.func @transform_2(%arg0: i32) -> (i32, i32) {
    %c0_i32 = arith.constant 0 : i32
    %c0_i32_0 = arith.constant 0 : i32
    %c0_i32_1 = arith.constant 0 : i32
    return %c0_i32, %c0_i32_0 : i32, i32
  }
  func.func @transform_3(%arg0: i32) -> (i32, i32, i32) {
    %c0_i32 = arith.constant 0 : i32
    %c0_i32_0 = arith.constant 0 : i32
    %c0_i32_1 = arith.constant 0 : i32
    return %arg0, %c0_i32, %c0_i32_0 : i32, i32, i32
  }
  func.func @transform_4(%arg0: i32) -> (i32, i32, i32) {
    %c0_i32 = arith.constant 0 : i32
    %c0_i32_0 = arith.constant 0 : i32
    %c0_i32_1 = arith.constant 0 : i32
    return %arg0, %c0_i32, %c0_i32_0 : i32, i32, i32
  }
  func.func @transform_5(%arg0: i32) -> (i32, i32, i32) {
    %c0_i32 = arith.constant 0 : i32
    %c0_i32_0 = arith.constant 0 : i32
    %c0_i32_1 = arith.constant 0 : i32
    return %arg0, %c0_i32, %c0_i32_0 : i32, i32, i32
  }
}

</mosaic_0001>

<llo_original>
// kernel: tile.8
$region0: #{tile.8}
  #allocation0 [shape = 's32[1]{0}', space=sflag, size = 0x4, scoped, tag = 'scoped memory for tile.8']
  %s0 = inlined_call_operand.vmem [shape: f32[32], index: 0, kind: input, shape index: {}]
  %s1 = inlined_call_operand.vmem [shape: f32[2,32], index: 1, kind: output, shape index: {}]
  // Predicated region
  $region2: #{tile.8} parent=0 // pred_check
    _
  $region3: #{tile.8} parent=0 // pred_check_branch
    %3 = sbr.rel (0) target = $region5
  $region4: #{tile.8} parent=0 // pred_region
    _
  $region5: #{tile.8} parent=0 // pred_fallthru
    _
  %v4 = vld [vmem:[%s0] ss:$0 sm:$0xff]
  %5 = vst [vmem:[%s1] sm:$0x3] %v4

// kernel: tile.9
$region0: #{tile.9}
  %s0 = inlined_call_operand.vmem [shape: f32[2,32], index: 0, kind: input, shape index: {}]
  %s1 = inlined_call_operand.vmem [shape: f32[1,64], index: 1, kind: output, shape index: {}]
  $region1: #{tile.9} parent=0
    #allocation0 [shape = 'u8[4096]{0}', space=vmem, size = 0x1000, scoped, tag = 'scoped mem for output reshape']
    #allocation1 [shape = 'u8[4096]{0}', space=vmem, size = 0x1000, scoped, tag = 'scoped mem for input reshape']
    %s3 = sshll.u32 1, 2
    %s4 = ssub.s32 %s3, 1
    %v5 = vld [vmem:[%s0] sm:%s4]
    %6 = vst [vmem:[#allocation1] sm:%s4] %v5
    %v7 = vld [vmem:[#allocation1] sm:$0x1]
    %vm8 = vcmask 261120
    %9 = vst.msk [vmem:[#allocation0] sm:$0x1] %vm8, %v7
    %s10 = scalar_lea.vmem [#allocation1], 1
    %v11 = vld [vmem:[%s10] sm:$0x1]
    %12 = vrot.lane.b32.xlu0 %v11, 32
    %v13 = vpop.permute.xlu0 %12
    %vm14 = vcmask 523520
    %15 = vst.msk [vmem:[#allocation0] sm:$0x1] %vm14, %v13
    %s17 = sshll.u32 1, 1
    %s18 = ssub.s32 %s17, 1
    %v20 = vld [vmem:[#allocation0] sm:%s18]
    %s21 = sshll.u32 1, 1
    %s22 = ssub.s32 %s21, 1
    %23 = vst [vmem:[%s1] sm:%s22] %v20

// kernel: proteinconv2d_forward.1
$region0: #{proteinconv2d_forward.1}
  #allocation0 [shape = 'u32[]', space=smem, size = 0x4, offset = 0x4, fixed_abs, tag = 'smem constant byte address 0x4 - core index']
  #allocation1 [shape = 'u32[144,128]{1,0:T(1,128)}', space=vmem, size = 0x12000, scoped, tag = 'internal scratch']
  %s0 = inlined_call_operand.vmem [shape: bf16[2,30,128], index: 0, kind: input, shape index: {}]
  %s1 = inlined_call_operand.vmem [shape: bf16[3,128,64], index: 1, kind: input, shape index: {}]
  %s2 = inlined_call_operand.vmem [shape: f32[1,64], index: 2, kind: input, shape index: {}]
  %s3 = inlined_call_operand.vmem [shape: f32[2,28,64], index: 3, kind: output, shape index: {0}]
  %s4 = inlined_call_operand.vmem [shape: f32[1,1,64], index: 4, kind: output, shape index: {1}]
  %s5 = inlined_call_operand.vmem [shape: f32[1,1,64], index: 5, kind: output, shape index: {2}]
  %6 = xla_tuple %s3, %s4, %s5
  %s7 = sld [smem:[#allocation0]]
  $region38: #{proteinconv2d_forward.1} parent=0
    _
  %s9 = ssub.s32 1, %s7
  %s10 = scalar_select 0, %s9, %s7
  // Predicated region
  $region2: #{proteinconv2d_forward.1} parent=0 // pred_check
    _
  $region3: #{proteinconv2d_forward.1} parent=0 // pred_check_branch
    %12 = sbr.rel (0) target = $region5
  $region4: #{proteinconv2d_forward.1} parent=0 // pred_region
    _
  $region5: #{proteinconv2d_forward.1} parent=0 // pred_fallthru
    _
  // Predicated region
  $region6: #{proteinconv2d_forward.1} parent=0 // pred_check
    _
  $region7: #{proteinconv2d_forward.1} parent=0 // pred_check_branch
    %14 = sbr.rel (0) target = $region9
  $region8: #{proteinconv2d_forward.1} parent=0 // pred_region
    _
  $region9: #{proteinconv2d_forward.1} parent=0 // pred_fallthru
    _
  // Predicated region
  $region10: #{proteinconv2d_forward.1} parent=0 // pred_check
    _
  $region11: #{proteinconv2d_forward.1} parent=0 // pred_check_branch
    %16 = sbr.rel (0) target = $region13
  $region12: #{proteinconv2d_forward.1} parent=0 // pred_region
    _
  $region13: #{proteinconv2d_forward.1} parent=0 // pred_fallthru
    _
  %v18 = vld [vmem:[%s0] sm:$0xf]
  %v19 = vld [vmem:[%s0 + $0x4] sm:$0xf]
  %v20 = vld [vmem:[%s0 + $0x8] sm:$0xf]
  %v21 = vld [vmem:[%s0 + $0xc] sm:$0x3]
  %v22 = vld [vmem:[%s1] sm:$0xf]
  %v23 = vld [vmem:[%s1 + $0x4] sm:$0xf]
  %v24 = vld [vmem:[%s1 + $0x8] sm:$0xf]
  %v25 = vld [vmem:[%s1 + $0xc] sm:$0xf]
  %v26 = vld [vmem:[%s1 + $0x10] sm:$0xf]
  %v27 = vld [vmem:[%s1 + $0x14] sm:$0xf]
  %v28 = vld [vmem:[%s1 + $0x18] sm:$0xf]
  %v29 = vld [vmem:[%s1 + $0x1c] sm:$0xf]
  %v30 = vld [vmem:[%s1 + $0x20] sm:$0xf]
  %v31 = vld [vmem:[%s1 + $0x24] sm:$0xf]
  %v32 = vld [vmem:[%s1 + $0x28] sm:$0xf]
  %v33 = vld [vmem:[%s1 + $0x2c] sm:$0xf]
  %v34 = vld [vmem:[%s1 + $0x30] sm:$0xf]
  %v35 = vld [vmem:[%s1 + $0x34] sm:$0xf]
  %v36 = vld [vmem:[%s1 + $0x38] sm:$0xf]
  %v37 = vld [vmem:[%s1 + $0x3c] sm:$0xf]
  %v38 = vld [vmem:[%s0 + $0xc] sm:$0x7]
  %s39 = scalar_lea.vmem %s1, 64
  %v40 = vld [vmem:[%s39] sm:$0xf]
  %v41 = vld [vmem:[%s39 + $0x4] sm:$0xf]
  %v42 = vld [vmem:[%s39 + $0x8] sm:$0xf]
  %v43 = vld [vmem:[%s39 + $0xc] sm:$0xf]
  %v44 = vld [vmem:[%s39 + $0x10] sm:$0xf]
  %v45 = vld [vmem:[%s39 + $0x14] sm:$0xf]
  %v46 = vld [vmem:[%s39 + $0x18] sm:$0xf]
  %v47 = vld [vmem:[%s39 + $0x1c] sm:$0xf]
  %v48 = vld [vmem:[%s39 + $0x20] sm:$0xf]
  %v49 = vld [vmem:[%s39 + $0x24] sm:$0xf]
  %v50 = vld [vmem:[%s39 + $0x28] sm:$0xf]
  %v51 = vld [vmem:[%s39 + $0x2c] sm:$0xf]
  %v52 = vld [vmem:[%s39 + $0x30] sm:$0xf]
  %v53 = vld [vmem:[%s39 + $0x34] sm:$0xf]
  %v54 = vld [vmem:[%s39 + $0x38] sm:$0xf]
  %v55 = vld [vmem:[%s39 + $0x3c] sm:$0xf]
  %v60 = vunpack.c.l.b16 %v18
  %v61 = vunpack.c.l.b16 %v19
  %v62 = vunpack.c.l.b16 %v20
  %v63 = vunpack.c.l.b16 %v38
  %v64 = vpack.c.b16 %v61, %v60
  %v65 = vpack.c.b16 %v63, %v62
  %vm66 = vsmask.f32 7424
  %v68 = vshrl.u32 %v64, 16
  %v70 = vshll.u32 %v64, 16
  %v72 = vrot.slane %v70, 1
  %v73 = vor.u32 %v68, %v72
  %v75 = vshll.u32 %v65, 16
  %v77 = vrot.slane %v75, 1
  %v78 = vsel %vm66, %v73, %v77
  %v79 = vshrl.u32 %v65, 16
  %v81 = vor.u32 %v79, %v77
  %v100 = vunpack.c.l.b16 %v40
  %v101 = vunpack.c.l.b16 %v41
  %v102 = vunpack.c.l.b16 %v42
  %v103 = vunpack.c.l.b16 %v43
  %v104 = vunpack.c.l.b16 %v44
  %v105 = vunpack.c.l.b16 %v45
  %v106 = vunpack.c.l.b16 %v46
  %v107 = vunpack.c.l.b16 %v47
  %v108 = vunpack.c.l.b16 %v48
  %v109 = vunpack.c.l.b16 %v49
  %v110 = vunpack.c.l.b16 %v50
  %v111 = vunpack.c.l.b16 %v51
  %v112 = vunpack.c.l.b16 %v52
  %v113 = vunpack.c.l.b16 %v53
  %v114 = vunpack.c.l.b16 %v54
  %v115 = vunpack.c.l.b16 %v55
  %v116 = vpack.c.b16 %v101, %v100
  %v117 = vpack.c.b16 %v103, %v102
  %v118 = vpack.c.b16 %v105, %v104
  %v119 = vpack.c.b16 %v107, %v106
  %v120 = vpack.c.b16 %v109, %v108
  %v121 = vpack.c.b16 %v111, %v110
  %v122 = vpack.c.b16 %v113, %v112
  %v123 = vpack.c.b16 %v115, %v114
  %132 = vmatprep.subr.bf16.mxu0 0
  %133 = vmatpush1.bf16.msra.mxu0 %v123
  %134 = vmatprep.subr.bf16.mxu0 0
  %135 = vmatpush1.bf16.msra.mxu0 %v122
  %136 = vmatprep.subr.bf16.mxu0 0
  %137 = vmatpush1.bf16.msra.mxu0 %v121
  %138 = vmatprep.subr.bf16.mxu0 0
  %139 = vmatpush1.bf16.msra.mxu0 %v120
  %140 = vmatprep.subr.bf16.mxu0 0
  %141 = vmatpush1.bf16.msra.mxu0 %v119
  %142 = vmatprep.subr.bf16.mxu0 0
  %143 = vmatpush1.bf16.msra.mxu0 %v118
  %144 = vmatprep.subr.bf16.mxu0 0
  %145 = vmatpush1.bf16.msra.mxu0 %v117
  %146 = vmatprep.subr.bf16.mxu0 0
  %147 = vmatpush1.bf16.msra.mxu0 %v116
  %148 = vmatprep.subr.bf16.mxu0 0
  %149 = vmatpush2.bf16.msra.mxu0 0
  %150 = vmatprep.subr.bf16.mxu0 0
  %151 = vmatpush2.bf16.msra.mxu0 0
  %152 = vmatprep.subr.bf16.mxu0 0
  %153 = vmatpush2.bf16.msra.mxu0 0
  %154 = vmatprep.subr.bf16.mxu0 0
  %155 = vmatpush2.bf16.msra.mxu0 0
  %156 = vmatprep.subr.bf16.mxu0 0
  %157 = vmatpush2.bf16.msra.mxu0 0
  %158 = vmatprep.subr.bf16.mxu0 0
  %159 = vmatpush2.bf16.msra.mxu0 0
  %160 = vmatprep.subr.bf16.mxu0 0
  %161 = vmatpush2.bf16.msra.mxu0 0
  %162 = vmatprep.subr.bf16.mxu0 0
  %163 = vmatpush2.bf16.msra.mxu0 0
  %164 = vmatprep.mubr.bf16.mxu0 0
  %165 = vmatmul.mubr.bf16.gmra.mxu0 %v78
  %v166 = vpop.f32.mrf.mxu0
  %v167 = vadd.f32 0.0, %v166
  %v168 = vpop.f32.mrf.mxu0
  %v169 = vpop.f32.mrf.mxu0
  %v170 = vadd.f32 0.0, %v169
  %v171 = vpop.f32.mrf.mxu0
  %172 = vmatprep.mubr.bf16.mxu0 0
  %173 = vmatmul.mubr.bf16.gmra.mxu0 %v81
  %v174 = vpop.f32.mrf.mxu0
  %v175 = vadd.f32 0.0, %v174
  %v176 = vpop.f32.mrf.mxu0
  %v177 = vpop.f32.mrf.mxu0
  %v178 = vadd.f32 0.0, %v177
  %v179 = vpop.f32.mrf.mxu0
  %180 = vdwg.mxu0
  %v182 = vunpack.c.l.b16 %v21
  %v183 = vpack.c.b16 %v182, %v62
  %v202 = vunpack.c.l.b16 %v22
  %v203 = vunpack.c.l.b16 %v23
  %v204 = vunpack.c.l.b16 %v24
  %v205 = vunpack.c.l.b16 %v25
  %v206 = vunpack.c.l.b16 %v26
  %v207 = vunpack.c.l.b16 %v27
  %v208 = vunpack.c.l.b16 %v28
  %v209 = vunpack.c.l.b16 %v29
  %v210 = vunpack.c.l.b16 %v30
  %v211 = vunpack.c.l.b16 %v31
  %v212 = vunpack.c.l.b16 %v32
  %v213 = vunpack.c.l.b16 %v33
  %v214 = vunpack.c.l.b16 %v34
  %v215 = vunpack.c.l.b16 %v35
  %v216 = vunpack.c.l.b16 %v36
  %v217 = vunpack.c.l.b16 %v37
  %v218 = vpack.c.b16 %v203, %v202
  %v219 = vpack.c.b16 %v205, %v204
  %v220 = vpack.c.b16 %v207, %v206
  %v221 = vpack.c.b16 %v209, %v208
  %v222 = vpack.c.b16 %v211, %v210
  %v223 = vpack.c.b16 %v213, %v212
  %v224 = vpack.c.b16 %v215, %v214
  %v225 = vpack.c.b16 %v217, %v216
  %234 = vmatprep.subr.bf16.mxu0 0
  %235 = vmatpush1.bf16.msra.mxu0 %v225
  %236 = vmatprep.subr.bf16.mxu0 0
  %237 = vmatpush1.bf16.msra.mxu0 %v224
  %238 = vmatprep.subr.bf16.mxu0 0
  %239 = vmatpush1.bf16.msra.mxu0 %v223
  %240 = vmatprep.subr.bf16.mxu0 0
  %241 = vmatpush1.bf16.msra.mxu0 %v222
  %242 = vmatprep.subr.bf16.mxu0 0
  %243 = vmatpush1.bf16.msra.mxu0 %v221
  %244 = vmatprep.subr.bf16.mxu0 0
  %245 = vmatpush1.bf16.msra.mxu0 %v220
  %246 = vmatprep.subr.bf16.mxu0 0
  %247 = vmatpush1.bf16.msra.mxu0 %v219
  %248 = vmatprep.subr.bf16.mxu0 0
  %249 = vmatpush1.bf16.msra.mxu0 %v218
  %250 = vmatprep.subr.bf16.mxu0 0
  %251 = vmatpush2.bf16.msra.mxu0 0
  %252 = vmatprep.subr.bf16.mxu0 0
  %253 = vmatpush2.bf16.msra.mxu0 0
  %254 = vmatprep.subr.bf16.mxu0 0
  %255 = vmatpush2.bf16.msra.mxu0 0
  %256 = vmatprep.subr.bf16.mxu0 0
  %257 = vmatpush2.bf16.msra.mxu0 0
  %258 = vmatprep.subr.bf16.mxu0 0
  %259 = vmatpush2.bf16.msra.mxu0 0
  %260 = vmatprep.subr.bf16.mxu0 0
  %261 = vmatpush2.bf16.msra.mxu0 0
  %262 = vmatprep.subr.bf16.mxu0 0
  %263 = vmatpush2.bf16.msra.mxu0 0
  %264 = vmatprep.subr.bf16.mxu0 0
  %265 = vmatpush2.bf16.msra.mxu0 0
  %266 = vmatprep.mubr.bf16.mxu0 0
  %267 = vmatmul.mubr.bf16.gmra.mxu0 %v64
  %v268 = vpop.f32.mrf.mxu0
  %v269 = vadd.f32 %v167, %v268
  %v270 = vpop.f32.mrf.mxu0
  %v271 = vpop.f32.mrf.mxu0
  %v272 = vadd.f32 %v170, %v271
  %v273 = vpop.f32.mrf.mxu0
  %274 = vmatprep.mubr.bf16.mxu0 0
  %275 = vmatmul.mubr.bf16.gmra.mxu0 %v183
  %v276 = vpop.f32.mrf.mxu0
  %v277 = vadd.f32 %v175, %v276
  %v278 = vpop.f32.mrf.mxu0
  %v279 = vpop.f32.mrf.mxu0
  %v280 = vadd.f32 %v178, %v279
  %v281 = vpop.f32.mrf.mxu0
  %282 = vdwg.mxu0
  %v283 = vld [vmem:[%s0] sm:$0xe]
  %s284 = scalar_lea.vmem %s1, 128
  %v285 = vld [vmem:[%s284] sm:$0xf]
  %v286 = vld [vmem:[%s284 + $0x4] sm:$0xf]
  %v287 = vld [vmem:[%s284 + $0x8] sm:$0xf]
  %v288 = vld [vmem:[%s284 + $0xc] sm:$0xf]
  %v289 = vld [vmem:[%s284 + $0x10] sm:$0xf]
  %v290 = vld [vmem:[%s284 + $0x14] sm:$0xf]
  %v291 = vld [vmem:[%s284 + $0x18] sm:$0xf]
  %v292 = vld [vmem:[%s284 + $0x1c] sm:$0xf]
  %v293 = vld [vmem:[%s284 + $0x20] sm:$0xf]
  %v294 = vld [vmem:[%s284 + $0x24] sm:$0xf]
  %v295 = vld [vmem:[%s284 + $0x28] sm:$0xf]
  %v296 = vld [vmem:[%s284 + $0x2c] sm:$0xf]
  %v297 = vld [vmem:[%s284 + $0x30] sm:$0xf]
  %v298 = vld [vmem:[%s284 + $0x34] sm:$0xf]
  %v299 = vld [vmem:[%s284 + $0x38] sm:$0xf]
  %v300 = vld [vmem:[%s284 + $0x3c] sm:$0xf]
  %v302 = vunpack.c.l.b16 %v283
  %v303 = vpack.c.b16 %v61, %v302
  %vm304 = vcmask 1046528
  %v305 = vrot.slane %v303, 1
  %v306 = vrot.slane %v65, 1
  %v307 = vsel %vm304, %v305, %v306
  %v326 = vunpack.c.l.b16 %v285
  %v327 = vunpack.c.l.b16 %v286
  %v328 = vunpack.c.l.b16 %v287
  %v329 = vunpack.c.l.b16 %v288
  %v330 = vunpack.c.l.b16 %v289
  %v331 = vunpack.c.l.b16 %v290
  %v332 = vunpack.c.l.b16 %v291
  %v333 = vunpack.c.l.b16 %v292
  %v334 = vunpack.c.l.b16 %v293
  %v335 = vunpack.c.l.b16 %v294
  %v336 = vunpack.c.l.b16 %v295
  %v337 = vunpack.c.l.b16 %v296
  %v338 = vunpack.c.l.b16 %v297
  %v339 = vunpack.c.l.b16 %v298
  %v340 = vunpack.c.l.b16 %v299
  %v341 = vunpack.c.l.b16 %v300
  %v342 = vpack.c.b16 %v327, %v326
  %v343 = vpack.c.b16 %v329, %v328
  %v344 = vpack.c.b16 %v331, %v330
  %v345 = vpack.c.b16 %v333, %v332
  %v346 = vpack.c.b16 %v335, %v334
  %v347 = vpack.c.b16 %v337, %v336
  %v348 = vpack.c.b16 %v339, %v338
  %v349 = vpack.c.b16 %v341, %v340
  %358 = vmatprep.subr.bf16.mxu0 0
  %359 = vmatpush1.bf16.msra.mxu0 %v349
  %360 = vmatprep.subr.bf16.mxu0 0
  %361 = vmatpush1.bf16.msra.mxu0 %v348
  %362 = vmatprep.subr.bf16.mxu0 0
  %363 = vmatpush1.bf16.msra.mxu0 %v347
  %364 = vmatprep.subr.bf16.mxu0 0
  %365 = vmatpush1.bf16.msra.mxu0 %v346
  %366 = vmatprep.subr.bf16.mxu0 0
  %367 = vmatpush1.bf16.msra.mxu0 %v345
  %368 = vmatprep.subr.bf16.mxu0 0
  %369 = vmatpush1.bf16.msra.mxu0 %v344
  %370 = vmatprep.subr.bf16.mxu0 0
  %371 = vmatpush1.bf16.msra.mxu0 %v343
  %372 = vmatprep.subr.bf16.mxu0 0
  %373 = vmatpush1.bf16.msra.mxu0 %v342
  %374 = vmatprep.subr.bf16.mxu0 0
  %375 = vmatpush2.bf16.msra.mxu0 0
  %376 = vmatprep.subr.bf16.mxu0 0
  %377 = vmatpush2.bf16.msra.mxu0 0
  %378 = vmatprep.subr.bf16.mxu0 0
  %379 = vmatpush2.bf16.msra.mxu0 0
  %380 = vmatprep.subr.bf16.mxu0 0
  %381 = vmatpush2.bf16.msra.mxu0 0
  %382 = vmatprep.subr.bf16.mxu0 0
  %383 = vmatpush2.bf16.msra.mxu0 0
  %384 = vmatprep.subr.bf16.mxu0 0
  %385 = vmatpush2.bf16.msra.mxu0 0
  %386 = vmatprep.subr.bf16.mxu0 0
  %387 = vmatpush2.bf16.msra.mxu0 0
  %388 = vmatprep.subr.bf16.mxu0 0
  %389 = vmatpush2.bf16.msra.mxu0 0
  %390 = vmatprep.mubr.bf16.mxu0 0
  %391 = vmatmul.mubr.bf16.gmra.mxu0 %v307
  %v392 = vpop.f32.mrf.mxu0
  %v393 = vadd.f32 0.0, %v392
  %v394 = vpop.f32.mrf.mxu0
  %v395 = vpop.f32.mrf.mxu0
  %v396 = vadd.f32 0.0, %v395
  %v397 = vpop.f32.mrf.mxu0
  %398 = vmatprep.mubr.bf16.mxu0 0
  %399 = vmatmul.mubr.bf16.gmra.mxu0 %v306
  %v400 = vpop.f32.mrf.mxu0
  %v401 = vadd.f32 0.0, %v400
  %v402 = vpop.f32.mrf.mxu0
  %v403 = vpop.f32.mrf.mxu0
  %v404 = vadd.f32 0.0, %v403
  %v405 = vpop.f32.mrf.mxu0
  %406 = vdwg.mxu0
  %v407 = vadd.f32 %v269, %v393
  %v408 = vadd.f32 %v272, %v396
  %v409 = vadd.f32 %v277, %v401
  %v410 = vadd.f32 %v280, %v404
  %v411 = vld [vmem:[%s2] sm:$0x1]
  %v413 = vlaneseq
  %v414 = vshrl.u32 %v413, 7
  %v415 = vsub.s32 0, %v414
  %v416 = vrot.slane %v411, %v415
  %v418 = vadd.f32 %v407, %v416
  %v419 = vadd.f32 %v408, %v416
  %v420 = vadd.f32 %v409, %v416
  %v421 = vadd.f32 %v410, %v416
  %v422 = vmax.f32 %v418, 0.0
  %v423 = vmax.f32 %v419, 0.0
  %v424 = vmax.f32 %v420, 0.0
  %v425 = vmax.f32 %v421, 0.0
  %vm426 = vcmask 523264
  %427 = vst.msk [vmem:[%s3] sm:$0xff] %vm426, %v422
  %428 = vst.msk [vmem:[%s3 + $0x8] sm:$0xff] %vm426, %v423
  %429 = vst.msk [vmem:[%s3 + $0x10] sm:$0xff] %vm426, %v424
  %vm430 = vcmask 519168
  %431 = vst.msk [vmem:[%s3 + $0x18] sm:$0xf] %vm430, %v425
  %v432 = vsel %vm426, %v422, 0.0
  %v433 = vsel %vm426, %v423, 0.0
  %v434 = vadd.f32 %v432, %v433
  %v435 = vsel %vm426, %v424, 0.0
  %v436 = vadd.f32 %v434, %v435
  %v437 = vsel %vm430, %v425, 0.0
  %v438 = vadd.f32 %v436, %v437
  %v439 = vrot.slane %v438, 4
  %v440 = vadd.f32 %v438, %v439
  %v441 = vrot.slane %v440, 2
  %v442 = vadd.f32 %v440, %v441
  %v443 = vrot.slane %v442, 1
  %v444 = vadd.f32 %v442, %v443
  %v445 = vadd.f32 %v444, 0.0
  %v446 = vmul.f32 %v422, %v422
  %v447 = vmul.f32 %v423, %v423
  %v448 = vmul.f32 %v424, %v424
  %v449 = vmul.f32 %v425, %v425
  %v450 = vsel %vm426, %v446, 0.0
  %v451 = vsel %vm426, %v447, 0.0
  %v452 = vadd.f32 %v450, %v451
  %v453 = vsel %vm426, %v448, 0.0
  %v454 = vadd.f32 %v452, %v453
  %v455 = vsel %vm430, %v449, 0.0
  %v456 = vadd.f32 %v454, %v455
  %v457 = vrot.slane %v456, 4
  %v458 = vadd.f32 %v456, %v457
  %v459 = vrot.slane %v458, 2
  %v460 = vadd.f32 %v458, %v459
  %v461 = vrot.slane %v460, 1
  %v462 = vadd.f32 %v460, %v461
  %v463 = vadd.f32 %v462, 0.0
  %s464 = scalar_lea.vmem %s0, 16
  %v465 = vld [vmem:[%s464] sm:$0xf]
  %v466 = vld [vmem:[%s464 + $0x4] sm:$0xf]
  %v467 = vld [vmem:[%s464 + $0x8] sm:$0xf]
  %v468 = vld [vmem:[%s464 + $0xc] sm:$0x3]
  %v469 = vld [vmem:[%s1] sm:$0xf]
  %v470 = vld [vmem:[%s1 + $0x4] sm:$0xf]
  %v471 = vld [vmem:[%s1 + $0x8] sm:$0xf]
  %v472 = vld [vmem:[%s1 + $0xc] sm:$0xf]
  %v473 = vld [vmem:[%s1 + $0x10] sm:$0xf]
  %v474 = vld [vmem:[%s1 + $0x14] sm:$0xf]
  %v475 = vld [vmem:[%s1 + $0x18] sm:$0xf]
  %v476 = vld [vmem:[%s1 + $0x1c] sm:$0xf]
  %v477 = vld [vmem:[%s1 + $0x20] sm:$0xf]
  %v478 = vld [vmem:[%s1 + $0x24] sm:$0xf]
  %v479 = vld [vmem:[%s1 + $0x28] sm:$0xf]
  %v480 = vld [vmem:[%s1 + $0x2c] sm:$0xf]
  %v481 = vld [vmem:[%s1 + $0x30] sm:$0xf]
  %v482 = vld [vmem:[%s1 + $0x34] sm:$0xf]
  %v483 = vld [vmem:[%s1 + $0x38] sm:$0xf]
  %v484 = vld [vmem:[%s1 + $0x3c] sm:$0xf]
  %v485 = vld [vmem:[%s464 + $0xc] sm:$0x7]
  %v486 = vld [vmem:[%s39] sm:$0xf]
  %v487 = vld [vmem:[%s39 + $0x4] sm:$0xf]
  %v488 = vld [vmem:[%s39 + $0x8] sm:$0xf]
  %v489 = vld [vmem:[%s39 + $0xc] sm:$0xf]
  %v490 = vld [vmem:[%s39 + $0x10] sm:$0xf]
  %v491 = vld [vmem:[%s39 + $0x14] sm:$0xf]
  %v492 = vld [vmem:[%s39 + $0x18] sm:$0xf]
  %v493 = vld [vmem:[%s39 + $0x1c] sm:$0xf]
  %v494 = vld [vmem:[%s39 + $0x20] sm:$0xf]
  %v495 = vld [vmem:[%s39 + $0x24] sm:$0xf]
  %v496 = vld [vmem:[%s39 + $0x28] sm:$0xf]
  %v497 = vld [vmem:[%s39 + $0x2c] sm:$0xf]
  %v498 = vld [vmem:[%s39 + $0x30] sm:$0xf]
  %v499 = vld [vmem:[%s39 + $0x34] sm:$0xf]
  %v500 = vld [vmem:[%s39 + $0x38] sm:$0xf]
  %v501 = vld [vmem:[%s39 + $0x3c] sm:$0xf]
  %v506 = vunpack.c.l.b16 %v465
  %v507 = vunpack.c.l.b16 %v466
  %v508 = vunpack.c.l.b16 %v467
  %v509 = vunpack.c.l.b16 %v485
  %v510 = vpack.c.b16 %v507, %v506
  %v511 = vpack.c.b16 %v509, %v508
  %v513 = vshrl.u32 %v510, 16
  %v515 = vshll.u32 %v510, 16
  %v517 = vrot.slane %v515, 1
  %v518 = vor.u32 %v513, %v517
  %v520 = vshll.u32 %v511, 16
  %v522 = vrot.slane %v520, 1
  %v523 = vsel %vm66, %v518, %v522
  %v524 = vshrl.u32 %v511, 16
  %v526 = vor.u32 %v524, %v522
  %v545 = vunpack.c.l.b16 %v486
  %v546 = vunpack.c.l.b16 %v487
  %v547 = vunpack.c.l.b16 %v488
  %v548 = vunpack.c.l.b16 %v489
  %v549 = vunpack.c.l.b16 %v490
  %v550 = vunpack.c.l.b16 %v491
  %v551 = vunpack.c.l.b16 %v492
  %v552 = vunpack.c.l.b16 %v493
  %v553 = vunpack.c.l.b16 %v494
  %v554 = vunpack.c.l.b16 %v495
  %v555 = vunpack.c.l.b16 %v496
  %v556 = vunpack.c.l.b16 %v497
  %v557 = vunpack.c.l.b16 %v498
  %v558 = vunpack.c.l.b16 %v499
  %v559 = vunpack.c.l.b16 %v500
  %v560 = vunpack.c.l.b16 %v501
  %v561 = vpack.c.b16 %v546, %v545
  %v562 = vpack.c.b16 %v548, %v547
  %v563 = vpack.c.b16 %v550, %v549
  %v564 = vpack.c.b16 %v552, %v551
  %v565 = vpack.c.b16 %v554, %v553
  %v566 = vpack.c.b16 %v556, %v555
  %v567 = vpack.c.b16 %v558, %v557
  %v568 = vpack.c.b16 %v560, %v559
  %577 = vmatprep.subr.bf16.mxu0 0
  %578 = vmatpush1.bf16.msra.mxu0 %v568
  %579 = vmatprep.subr.bf16.mxu0 0
  %580 = vmatpush1.bf16.msra.mxu0 %v567
  %581 = vmatprep.subr.bf16.mxu0 0
  %582 = vmatpush1.bf16.msra.mxu0 %v566
  %583 = vmatprep.subr.bf16.mxu0 0
  %584 = vmatpush1.bf16.msra.mxu0 %v565
  %585 = vmatprep.subr.bf16.mxu0 0
  %586 = vmatpush1.bf16.msra.mxu0 %v564
  %587 = vmatprep.subr.bf16.mxu0 0
  %588 = vmatpush1.bf16.msra.mxu0 %v563
  %589 = vmatprep.subr.bf16.mxu0 0
  %590 = vmatpush1.bf16.msra.mxu0 %v562
  %591 = vmatprep.subr.bf16.mxu0 0
  %592 = vmatpush1.bf16.msra.mxu0 %v561
  %593 = vmatprep.subr.bf16.mxu0 0
  %594 = vmatpush2.bf16.msra.mxu0 0
  %595 = vmatprep.subr.bf16.mxu0 0
  %596 = vmatpush2.bf16.msra.mxu0 0
  %597 = vmatprep.subr.bf16.mxu0 0
  %598 = vmatpush2.bf16.msra.mxu0 0
  %599 = vmatprep.subr.bf16.mxu0 0
  %600 = vmatpush2.bf16.msra.mxu0 0
  %601 = vmatprep.subr.bf16.mxu0 0
  %602 = vmatpush2.bf16.msra.mxu0 0
  %603 = vmatprep.subr.bf16.mxu0 0
  %604 = vmatpush2.bf16.msra.mxu0 0
  %605 = vmatprep.subr.bf16.mxu0 0
  %606 = vmatpush2.bf16.msra.mxu0 0
  %607 = vmatprep.subr.bf16.mxu0 0
  %608 = vmatpush2.bf16.msra.mxu0 0
  %609 = vmatprep.mubr.bf16.mxu0 0
  %610 = vmatmul.mubr.bf16.gmra.mxu0 %v523
  %v611 = vpop.f32.mrf.mxu0
  %v612 = vadd.f32 0.0, %v611
  %v613 = vpop.f32.mrf.mxu0
  %v614 = vpop.f32.mrf.mxu0
  %v615 = vadd.f32 0.0, %v614
  %v616 = vpop.f32.mrf.mxu0
  %617 = vmatprep.mubr.bf16.mxu0 0
  %618 = vmatmul.mubr.bf16.gmra.mxu0 %v526
  %v619 = vpop.f32.mrf.mxu0
  %v620 = vadd.f32 0.0, %v619
  %v621 = vpop.f32.mrf.mxu0
  %v622 = vpop.f32.mrf.mxu0
  %v623 = vadd.f32 0.0, %v622
  %v624 = vpop.f32.mrf.mxu0
  %625 = vdwg.mxu0
  %v627 = vunpack.c.l.b16 %v468
  %v628 = vpack.c.b16 %v627, %v508
  %v647 = vunpack.c.l.b16 %v469
  %v648 = vunpack.c.l.b16 %v470
  %v649 = vunpack.c.l.b16 %v471
  %v650 = vunpack.c.l.b16 %v472
  %v651 = vunpack.c.l.b16 %v473
  %v652 = vunpack.c.l.b16 %v474
  %v653 = vunpack.c.l.b16 %v475
  %v654 = vunpack.c.l.b16 %v476
  %v655 = vunpack.c.l.b16 %v477
  %v656 = vunpack.c.l.b16 %v478
  %v657 = vunpack.c.l.b16 %v479
  %v658 = vunpack.c.l.b16 %v480
  %v659 = vunpack.c.l.b16 %v481
  %v660 = vunpack.c.l.b16 %v482
  %v661 = vunpack.c.l.b16 %v483
  %v662 = vunpack.c.l.b16 %v484
  %v663 = vpack.c.b16 %v648, %v647
  %v664 = vpack.c.b16 %v650, %v649
  %v665 = vpack.c.b16 %v652, %v651
  %v666 = vpack.c.b16 %v654, %v653
  %v667 = vpack.c.b16 %v656, %v655
  %v668 = vpack.c.b16 %v658, %v657
  %v669 = vpack.c.b16 %v660, %v659
  %v670 = vpack.c.b16 %v662, %v661
  %679 = vmatprep.subr.bf16.mxu0 0
  %680 = vmatpush1.bf16.msra.mxu0 %v670
  %681 = vmatprep.subr.bf16.mxu0 0
  %682 = vmatpush1.bf16.msra.mxu0 %v669
  %683 = vmatprep.subr.bf16.mxu0 0
  %684 = vmatpush1.bf16.msra.mxu0 %v668
  %685 = vmatprep.subr.bf16.mxu0 0
  %686 = vmatpush1.bf16.msra.mxu0 %v667
  %687 = vmatprep.subr.bf16.mxu0 0
  %688 = vmatpush1.bf16.msra.mxu0 %v666
  %689 = vmatprep.subr.bf16.mxu0 0
  %690 = vmatpush1.bf16.msra.mxu0 %v665
  %691 = vmatprep.subr.bf16.mxu0 0
  %692 = vmatpush1.bf16.msra.mxu0 %v664
  %693 = vmatprep.subr.bf16.mxu0 0
  %694 = vmatpush1.bf16.msra.mxu0 %v663
  %695 = vmatprep.subr.bf16.mxu0 0
  %696 = vmatpush2.bf16.msra.mxu0 0
  %697 = vmatprep.subr.bf16.mxu0 0
  %698 = vmatpush2.bf16.msra.mxu0 0
  %699 = vmatprep.subr.bf16.mxu0 0
  %700 = vmatpush2.bf16.msra.mxu0 0
  %701 = vmatprep.subr.bf16.mxu0 0
  %702 = vmatpush2.bf16.msra.mxu0 0
  %703 = vmatprep.subr.bf16.mxu0 0
  %704 = vmatpush2.bf16.msra.mxu0 0
  %705 = vmatprep.subr.bf16.mxu0 0
  %706 = vmatpush2.bf16.msra.mxu0 0
  %707 = vmatprep.subr.bf16.mxu0 0
  %708 = vmatpush2.bf16.msra.mxu0 0
  %709 = vmatprep.subr.bf16.mxu0 0
  %710 = vmatpush2.bf16.msra.mxu0 0
  %711 = vmatprep.mubr.bf16.mxu0 0
  %712 = vmatmul.mubr.bf16.gmra.mxu0 %v510
  %v713 = vpop.f32.mrf.mxu0
  %v714 = vadd.f32 %v612, %v713
  %v715 = vpop.f32.mrf.mxu0
  %v716 = vpop.f32.mrf.mxu0
  %v717 = vadd.f32 %v615, %v716
  %v718 = vpop.f32.mrf.mxu0
  %719 = vmatprep.mubr.bf16.mxu0 0
  %720 = vmatmul.mubr.bf16.gmra.mxu0 %v628
  %v721 = vpop.f32.mrf.mxu0
  %v722 = vadd.f32 %v620, %v721
  %v723 = vpop.f32.mrf.mxu0
  %v724 = vpop.f32.mrf.mxu0
  %v725 = vadd.f32 %v623, %v724
  %v726 = vpop.f32.mrf.mxu0
  %727 = vdwg.mxu0
  %v728 = vld [vmem:[%s464] sm:$0xe]
  %v729 = vld [vmem:[%s284] sm:$0xf]
  %v730 = vld [vmem:[%s284 + $0x4] sm:$0xf]
  %v731 = vld [vmem:[%s284 + $0x8] sm:$0xf]
  %v732 = vld [vmem:[%s284 + $0xc] sm:$0xf]
  %v733 = vld [vmem:[%s284 + $0x10] sm:$0xf]
  %v734 = vld [vmem:[%s284 + $0x14] sm:$0xf]
  %v735 = vld [vmem:[%s284 + $0x18] sm:$0xf]
  %v736 = vld [vmem:[%s284 + $0x1c] sm:$0xf]
  %v737 = vld [vmem:[%s284 + $0x20] sm:$0xf]
  %v738 = vld [vmem:[%s284 + $0x24] sm:$0xf]
  %v739 = vld [vmem:[%s284 + $0x28] sm:$0xf]
  %v740 = vld [vmem:[%s284 + $0x2c] sm:$0xf]
  %v741 = vld [vmem:[%s284 + $0x30] sm:$0xf]
  %v742 = vld [vmem:[%s284 + $0x34] sm:$0xf]
  %v743 = vld [vmem:[%s284 + $0x38] sm:$0xf]
  %v744 = vld [vmem:[%s284 + $0x3c] sm:$0xf]
  %v746 = vunpack.c.l.b16 %v728
  %v747 = vpack.c.b16 %v507, %v746
  %v748 = vrot.slane %v747, 1
  %v749 = vrot.slane %v511, 1
  %v750 = vsel %vm304, %v748, %v749
  %v769 = vunpack.c.l.b16 %v729
  %v770 = vunpack.c.l.b16 %v730
  %v771 = vunpack.c.l.b16 %v731
  %v772 = vunpack.c.l.b16 %v732
  %v773 = vunpack.c.l.b16 %v733
  %v774 = vunpack.c.l.b16 %v734
  %v775 = vunpack.c.l.b16 %v735
  %v776 = vunpack.c.l.b16 %v736
  %v777 = vunpack.c.l.b16 %v737
  %v778 = vunpack.c.l.b16 %v738
  %v779 = vunpack.c.l.b16 %v739
  %v780 = vunpack.c.l.b16 %v740
  %v781 = vunpack.c.l.b16 %v741
  %v782 = vunpack.c.l.b16 %v742
  %v783 = vunpack.c.l.b16 %v743
  %v784 = vunpack.c.l.b16 %v744
  %v785 = vpack.c.b16 %v770, %v769
  %v786 = vpack.c.b16 %v772, %v771
  %v787 = vpack.c.b16 %v774, %v773
  %v788 = vpack.c.b16 %v776, %v775
  %v789 = vpack.c.b16 %v778, %v777
  %v790 = vpack.c.b16 %v780, %v779
  %v791 = vpack.c.b16 %v782, %v781
  %v792 = vpack.c.b16 %v784, %v783
  %801 = vmatprep.subr.bf16.mxu0 0
  %802 = vmatpush1.bf16.msra.mxu0 %v792
  %803 = vmatprep.subr.bf16.mxu0 0
  %804 = vmatpush1.bf16.msra.mxu0 %v791
  %805 = vmatprep.subr.bf16.mxu0 0
  %806 = vmatpush1.bf16.msra.mxu0 %v790
  %807 = vmatprep.subr.bf16.mxu0 0
  %808 = vmatpush1.bf16.msra.mxu0 %v789
  %809 = vmatprep.subr.bf16.mxu0 0
  %810 = vmatpush1.bf16.msra.mxu0 %v788
  %811 = vmatprep.subr.bf16.mxu0 0
  %812 = vmatpush1.bf16.msra.mxu0 %v787
  %813 = vmatprep.subr.bf16.mxu0 0
  %814 = vmatpush1.bf16.msra.mxu0 %v786
  %815 = vmatprep.subr.bf16.mxu0 0
  %816 = vmatpush1.bf16.msra.mxu0 %v785
  %817 = vmatprep.subr.bf16.mxu0 0
  %818 = vmatpush2.bf16.msra.mxu0 0
  %819 = vmatprep.subr.bf16.mxu0 0
  %820 = vmatpush2.bf16.msra.mxu0 0
  %821 = vmatprep.subr.bf16.mxu0 0
  %822 = vmatpush2.bf16.msra.mxu0 0
  %823 = vmatprep.subr.bf16.mxu0 0
  %824 = vmatpush2.bf16.msra.mxu0 0
  %825 = vmatprep.subr.bf16.mxu0 0
  %826 = vmatpush2.bf16.msra.mxu0 0
  %827 = vmatprep.subr.bf16.mxu0 0
  %828 = vmatpush2.bf16.msra.mxu0 0
  %829 = vmatprep.subr.bf16.mxu0 0
  %830 = vmatpush2.bf16.msra.mxu0 0
  %831 = vmatprep.subr.bf16.mxu0 0
  %832 = vmatpush2.bf16.msra.mxu0 0
  %833 = vmatprep.mubr.bf16.mxu0 0
  %834 = vmatmul.mubr.bf16.gmra.mxu0 %v750
  %v835 = vpop.f32.mrf.mxu0
  %v836 = vadd.f32 0.0, %v835
  %v837 = vpop.f32.mrf.mxu0
  %v838 = vpop.f32.mrf.mxu0
  %v839 = vadd.f32 0.0, %v838
  %v840 = vpop.f32.mrf.mxu0
  %841 = vmatprep.mubr.bf16.mxu0 0
  %842 = vmatmul.mubr.bf16.gmra.mxu0 %v749
  %v843 = vpop.f32.mrf.mxu0
  %v844 = vadd.f32 0.0, %v843
  %v845 = vpop.f32.mrf.mxu0
  %v846 = vpop.f32.mrf.mxu0
  %v847 = vadd.f32 0.0, %v846
  %v848 = vpop.f32.mrf.mxu0
  %849 = vdwg.mxu0
  %v850 = vadd.f32 %v714, %v836
  %v851 = vadd.f32 %v717, %v839
  %v852 = vadd.f32 %v722, %v844
  %v853 = vadd.f32 %v725, %v847
  %v854 = vld [vmem:[%s2] sm:$0x1]
  %v856 = vlaneseq
  %v857 = vshrl.u32 %v856, 7
  %v858 = vsub.s32 0, %v857
  %v859 = vrot.slane %v854, %v858
  %v861 = vadd.f32 %v850, %v859
  %v862 = vadd.f32 %v851, %v859
  %v863 = vadd.f32 %v852, %v859
  %v864 = vadd.f32 %v853, %v859
  %v865 = vmax.f32 %v861, 0.0
  %v866 = vmax.f32 %v862, 0.0
  %v867 = vmax.f32 %v863, 0.0
  %v868 = vmax.f32 %v864, 0.0
  %s869 = scalar_lea.vmem %s3, 32
  %870 = vst.msk [vmem:[%s869] sm:$0xff] %vm426, %v865
  %871 = vst.msk [vmem:[%s869 + $0x8] sm:$0xff] %vm426, %v866
  %872 = vst.msk [vmem:[%s869 + $0x10] sm:$0xff] %vm426, %v867
  %873 = vst.msk [vmem:[%s869 + $0x18] sm:$0xf] %vm430, %v868
  %v874 = vsel %vm426, %v865, 0.0
  %v875 = vsel %vm426, %v866, 0.0
  %v876 = vadd.f32 %v874, %v875
  %v877 = vsel %vm426, %v867, 0.0
  %v878 = vadd.f32 %v876, %v877
  %v879 = vsel %vm430, %v868, 0.0
  %v880 = vadd.f32 %v878, %v879
  %v881 = vrot.slane %v880, 4
  %v882 = vadd.f32 %v880, %v881
  %v883 = vrot.slane %v882, 2
  %v884 = vadd.f32 %v882, %v883
  %v885 = vrot.slane %v884, 1
  %v886 = vadd.f32 %v884, %v885
  %v887 = vadd.f32 %v445, %v886
  %v888 = vmul.f32 %v865, %v865
  %v889 = vmul.f32 %v866, %v866
  %v890 = vmul.f32 %v867, %v867
  %v891 = vmul.f32 %v868, %v868
  %v892 = vsel %vm426, %v888, 0.0
  %v893 = vsel %vm426, %v889, 0.0
  %v894 = vadd.f32 %v892, %v893
  %v895 = vsel %vm426, %v890, 0.0
  %v896 = vadd.f32 %v894, %v895
  %v897 = vsel %vm430, %v891, 0.0
  %v898 = vadd.f32 %v896, %v897
  %v899 = vrot.slane %v898, 4
  %v900 = vadd.f32 %v898, %v899
  %v901 = vrot.slane %v900, 2
  %v902 = vadd.f32 %v900, %v901
  %v903 = vrot.slane %v902, 1
  %v904 = vadd.f32 %v902, %v903
  %v905 = vadd.f32 %v463, %v904
  %vm906 = vcmask 516096
  %907 = vst.msk [vmem:[%s4] sm:$0x1] %vm906, %v887
  %908 = vst.msk [vmem:[%s5] sm:$0x1] %vm906, %v905
  // Predicated region
  $region14: #{proteinconv2d_forward.1} parent=0 // pred_check
    _
  $region15: #{proteinconv2d_forward.1} parent=0 // pred_check_branch
    %910 = sbr.rel (0) target = $region17
  $region16: #{proteinconv2d_forward.1} parent=0 // pred_region
    _
  $region17: #{proteinconv2d_forward.1} parent=0 // pred_fallthru
    _
  // Predicated region
  $region18: #{proteinconv2d_forward.1} parent=0 // pred_check
    _
  $region19: #{proteinconv2d_forward.1} parent=0 // pred_check_branch
    %912 = sbr.rel (0) target = $region21
  $region20: #{proteinconv2d_forward.1} parent=0 // pred_region
    _
  $region21: #{proteinconv2d_forward.1} parent=0 // pred_fallthru
    _
  // Predicated region
  $region22: #{proteinconv2d_forward.1} parent=0 // pred_check
    _
  $region23: #{proteinconv2d_forward.1} parent=0 // pred_check_branch
    %914 = sbr.rel (0) target = $region25
  $region24: #{proteinconv2d_forward.1} parent=0 // pred_region
    _
  $region25: #{proteinconv2d_forward.1} parent=0 // pred_fallthru
    _
  // Predicated region
  $region26: #{proteinconv2d_forward.1} parent=0 // pred_check
    _
  $region27: #{proteinconv2d_forward.1} parent=0 // pred_check_branch
    %916 = sbr.rel (0) target = $region29
  $region28: #{proteinconv2d_forward.1} parent=0 // pred_region
    _
  $region29: #{proteinconv2d_forward.1} parent=0 // pred_fallthru
    _
  // Predicated region
  $region30: #{proteinconv2d_forward.1} parent=0 // pred_check
    _
  $region31: #{proteinconv2d_forward.1} parent=0 // pred_check_branch
    %918 = sbr.rel (0) target = $region33
  $region32: #{proteinconv2d_forward.1} parent=0 // pred_region
    _
  $region33: #{proteinconv2d_forward.1} parent=0 // pred_fallthru
    _
  // Predicated region
  $region34: #{proteinconv2d_forward.1} parent=0 // pred_check
    _
  $region35: #{proteinconv2d_forward.1} parent=0 // pred_check_branch
    %920 = sbr.rel (0) target = $region37
  $region36: #{proteinconv2d_forward.1} parent=0 // pred_region
    _
  $region37: #{proteinconv2d_forward.1} parent=0 // pred_fallthru
    _

</llo_original>
